<compile_context>
chip_gen: v5e
topology: v5e:2x2
jax: 0.10.0
libtpu: 0.0.40
codegen_flags: <defaults>
</compile_context>

<pallas_src>
import functools

import jax
import jax.numpy as jnp
from jax.experimental import pallas as pl
from jax.experimental.pallas import tpu as pltpu


def _round_up(n, m):
    return ((n + m - 1) // m) * m


# ----------------------------------------------------------------------------- kernel
def cheb_eegnet_kernel(x_ref, lhat_ref, pool_ref,
                       w1_ref, b1_ref, w2_ref, b2_ref, wl_ref, bl_ref,
                       out_ref, *, K):
    """Whole forward in one VMEM-resident kernel (feature-major layout)."""
    lhat = lhat_ref[...]                       # (Np, Np) bf16, equals L_hat^T (padded)

    def cheb_conv(h_t, w_t, b):
        # h_t : (C, Np) f32      activations, nodes on the lane axis
        # w_t : (Cout, K*C) bf16 per-order weights stacked along the contraction axis
        # b   : (Cout, 1) f32
        txs = [h_t]                            # T_0 = h
        if K > 1:
            t1 = jnp.dot(h_t.astype(jnp.bfloat16), lhat,
                         preferred_element_type=jnp.float32)
            txs.append(t1)                     # T_1 = L_hat h   (transposed form)
            t_prev, t_cur = h_t, t1
            for _ in range(2, K):
                t_next = (2.0 * jnp.dot(t_cur.astype(jnp.bfloat16), lhat,
                                        preferred_element_type=jnp.float32)
                          - t_prev)            # recurrence kept in f32
                txs.append(t_next)
                t_prev, t_cur = t_cur, t_next
        # Fused weight matmul: one (Cout, K*C) @ (K*C, Np) dot instead of K tiny dots.
        tx_stack = jnp.concatenate(txs, axis=0).astype(jnp.bfloat16)   # (K*C, Np)
        out = jnp.dot(w_t, tx_stack, preferred_element_type=jnp.float32)
        return out + b                         # (Cout, Np), bias broadcast over lanes

    h = jnp.maximum(cheb_conv(x_ref[...], w1_ref[...], b1_ref[...]), 0.0)   # (H, Np)
    h = jnp.maximum(cheb_conv(h, w2_ref[...], b2_ref[...]), 0.0)            # (H, Np)

    # Global pooling as a matmul with the (Np, G) pooling matrix, then linear head.
    g_t = jnp.dot(h.astype(jnp.bfloat16), pool_ref[...],
                  preferred_element_type=jnp.float32)                       # (H, G)
    out_ref[...] = (jnp.dot(wl_ref[...], g_t, preferred_element_type=jnp.float32)
                    + bl_ref[...])                                          # (Cout, G)


# ----------------------------------------------------------------------------- graph prep
def precompute_graph_operators(edge_index, batch, num_nodes, num_graphs,
                               pooling_type="mean", lane_pad=128):
    """Build the (transposed, bf16) scaled Laplacian and the (transposed) pooling
    matrix once per static graph, zero-padded so the node axis is lane-dense.
    Hoisted out of the per-call wrapper: for a fixed electrode montage this runs
    once, not every forward."""
    N = num_nodes
    Np = max(lane_pad, _round_up(N, lane_pad))

    row, col = edge_index[0], edge_index[1]
    adj = jnp.zeros((N, N), jnp.float32).at[row, col].add(1.0)
    deg = adj.sum(axis=1)
    dinv = jnp.where(deg > 0, 1.0 / jnp.sqrt(jnp.maximum(deg, 1e-12)), 0.0)
    # PyG ChebConv, normalization='sym', lambda_max=2.0  ->  L_hat = -A_norm.
    # (Only valid under those exact defaults: no self-loops / per-graph lambda_max.)
    lhat = -(dinv[:, None] * adj * dinv[None, :])
    lhat_t = jnp.zeros((Np, Np), jnp.float32).at[:N, :N].set(lhat.T)

    G = num_graphs
    onehot = (batch[None, :] == jnp.arange(G)[:, None]).astype(jnp.float32)  # (G, N)
    if pooling_type == "mean":
        pool = onehot / jnp.maximum(onehot.sum(axis=1, keepdims=True), 1.0)
    elif pooling_type in ("sum", "add"):
        pool = onehot
    else:
        # TODO(synk): max pooling has no matmul form; only mean/sum implemented.
        raise NotImplementedError(f"pooling_type={pooling_type}")
    pool_t = jnp.zeros((Np, G), jnp.float32).at[:N, :].set(pool.T)

    return lhat_t.astype(jnp.bfloat16), pool_t.astype(jnp.bfloat16)


def pack_params(params, K):
    """Transpose to feature-major and stack the K per-order ChebConv weights along
    the contraction axis (bf16); biases and the tiny linear head stay f32."""
    def stack(w):                              # (K, Cin, Cout) -> (Cout, K*Cin)
        Kk, Ci, Co = w.shape
        assert Kk == K
        return jnp.transpose(w, (2, 0, 1)).reshape(Co, Kk * Ci).astype(jnp.bfloat16)

    return {
        "w1": stack(params["w1"]),
        "b1": params["b1"].reshape(-1, 1).astype(jnp.float32),
        "w2": stack(params["w2"]),
        "b2": params["b2"].reshape(-1, 1).astype(jnp.float32),
        "wl": params["w_lin"].T.astype(jnp.float32),      # (Cout, H)
        "bl": params["b_lin"].reshape(-1, 1).astype(jnp.float32),
    }


# ----------------------------------------------------------------------------- wrapper
def cheb_eegnet_forward(x, lhat_t, pool_t, packed, *, K):
    """Pad/transpose the node features and run the fused Pallas kernel."""
    N, Cin = x.shape
    Np = lhat_t.shape[0]
    G = pool_t.shape[1]
    H = packed["b1"].shape[0]
    Cout = packed["bl"].shape[0]

    x_t = jnp.zeros((Cin, Np), jnp.float32).at[:, :N].set(x.T)

    # Cost estimate (helps XLA schedule the custom call) and an explicit scoped-VMEM
    # limit sized to the resident set (clamped to 64 MiB, safe on v5e/v6e/v7x).
    flops = 2 * ((K - 1) * Cin * Np * Np          # conv1 Chebyshev recurrences
                 + H * (K * Cin) * Np             # conv1 fused weight matmul
                 + (K - 1) * H * Np * Np          # conv2 Chebyshev recurrences
                 + H * (K * H) * Np               # conv2 fused weight matmul
                 + H * Np * G                     # pooling
                 + Cout * H * G)                  # linear head
    in_bytes = (2 * Np * Np + 4 * Cin * Np + 2 * Np * G
                + 2 * (H * K * Cin + H * K * H) + 4 * (Cout * H + 2 * H + Cout))
    cost = pl.CostEstimate(flops=flops, transcendentals=0,
                           bytes_accessed=in_bytes + 4 * Cout * G)
    resident = (2 * Np * Np                                   # lhat (bf16)
                + 4 * Np * (Cin * (K + 1) + H * (2 * K + 3) + G)  # acts / T buffers
                + in_bytes + (1 << 20))
    vmem_limit = int(min(64 << 20, max(2 * resident, 32 << 20)))

    # TODO(synk): for very large N on v7x (64 MiB VMEM, 2 TensorCores) split L_hat
    # over node-row blocks with a real grid + dimension_semantics=("parallel", ...);
    # that needs one pallas_call per ChebConv so intermediates round-trip HBM.
    kernel = functools.partial(cheb_eegnet_kernel, K=K)
    vmem = pl.BlockSpec(memory_space=pltpu.MemorySpace.VMEM)
    out_t = pl.pallas_call(
        kernel,
        out_shape=jax.ShapeDtypeStruct((Cout, G), jnp.float32),
        in_specs=[vmem] * 9,
        out_specs=vmem,
        compiler_params=pltpu.CompilerParams(vmem_limit_bytes=vmem_limit),
        cost_estimate=cost,
    )(x_t, lhat_t, pool_t,
      packed["w1"], packed["b1"], packed["w2"], packed["b2"],
      packed["wl"], packed["bl"])
    return out_t.T                                            # (G, Cout)


# ----------------------------------------------------------------------------- reference
def _reference(x, edge_index, batch, params, *, K, num_graphs, pooling_type="mean"):
    """Pure-JAX f32 reference mirroring the PyTorch forward."""
    N = x.shape[0]
    row, col = edge_index[0], edge_index[1]
    adj = jnp.zeros((N, N), jnp.float32).at[row, col].add(1.0)
    deg = adj.sum(axis=1)
    dinv = jnp.where(deg > 0, 1.0 / jnp.sqrt(jnp.maximum(deg, 1e-12)), 0.0)
    lhat = -(dinv[:, None] * adj * dinv[None, :])

    def cheb(h, w, b):
        out = h @ w[0]
        if K > 1:
            tp, tc = h, lhat @ h
            out = out + tc @ w[1]
            for k in range(2, K):
                tn = 2.0 * (lhat @ tc) - tp
                out = out + tn @ w[k]
                tp, tc = tc, tn
        return out + b

    h = jnp.maximum(cheb(x, params["w1"], params["b1"]), 0.0)
    h = jnp.maximum(cheb(h, params["w2"], params["b2"]), 0.0)
    onehot = (batch[None, :] == jnp.arange(num_graphs)[:, None]).astype(jnp.float32)
    if pooling_type == "mean":
        pool = onehot / jnp.maximum(onehot.sum(axis=1, keepdims=True), 1.0)
    else:
        pool = onehot
    g = pool @ h
    return g @ params["w_lin"] + params["b_lin"]


# ----------------------------------------------------------------------------- demo
if __name__ == "__main__":
    # Small problem: 2 graphs of 8 nodes each (N=16), ring topology within each graph.
    N, Cin, H, Cout, K, G = 16, 4, 32, 8, 3, 2
    nodes_per_graph = N // G

    key = jax.random.PRNGKey(0)
    kx, k1, k2, k3, k4, k5, k6 = jax.random.split(key, 7)

    x = jax.random.normal(kx, (N, Cin), jnp.float32)

    batch = jnp.repeat(jnp.arange(G, dtype=jnp.int32), nodes_per_graph)
    src, dst = [], []
    for g in range(G):
        o = g * nodes_per_graph
        for i in range(nodes_per_graph):
            a, b = o + i, o + (i + 1) % nodes_per_graph
            src += [a, b]
            dst += [b, a]
    edge_index = jnp.array([src, dst], dtype=jnp.int32)          # (2, E)

    # Parameter shapes follow ChebConv(K, Cin, Cout) + Linear.
    params = {
        "w1": 0.1 * jax.random.normal(k1, (K, Cin, H), jnp.float32),
        "b1": 0.1 * jax.random.normal(k2, (1, H), jnp.float32),
        "w2": 0.1 * jax.random.normal(k3, (K, H, H), jnp.float32),
        "b2": 0.1 * jax.random.normal(k4, (1, H), jnp.float32),
        "w_lin": 0.1 * jax.random.normal(k5, (H, Cout), jnp.float32),
        "b_lin": 0.1 * jax.random.normal(k6, (1, Cout), jnp.float32),
    }

    # Graph operators + packed weights are built once (static graph) and reused.
    lhat_t, pool_t = precompute_graph_operators(edge_index, batch, N, G,
                                                pooling_type="mean")
    packed = pack_params(params, K)

    out = cheb_eegnet_forward(x, lhat_t, pool_t, packed, K=K)
    out = jax.block_until_ready(out)

    ref = _reference(x, edge_index, batch, params, K=K, num_graphs=G,
                     pooling_type="mean")
    assert out.shape == (G, Cout)
    assert jnp.allclose(out, ref, rtol=2e-2, atol=2e-2), (out, ref)

    print("KERNEL_OK")
</pallas_src>

<mosaic_0001>
module attributes {stable_mosaic.version = 11 : i64} {
  func.func @cheb_eegnet_kernel(%arg0: memref<4x128xf32, #tpu.memory_space<vmem>>, %arg1: memref<128x128xbf16, #tpu.memory_space<vmem>>, %arg2: memref<128x2xbf16, #tpu.memory_space<vmem>>, %arg3: memref<32x12xbf16, #tpu.memory_space<vmem>>, %arg4: memref<32x1xf32, #tpu.memory_space<vmem>>, %arg5: memref<32x96xbf16, #tpu.memory_space<vmem>>, %arg6: memref<32x1xf32, #tpu.memory_space<vmem>>, %arg7: memref<8x32xf32, #tpu.memory_space<vmem>>, %arg8: memref<8x1xf32, #tpu.memory_space<vmem>>, %arg9: memref<8x2xf32, #tpu.memory_space<vmem>>) attributes {dimension_semantics = [], scalar_prefetch = 0 : i64, scratch_operands = 0 : i64, tpu.core_type = #tpu.core_type<tc>} {
    %c0 = arith.constant 0 : index
    %c0_0 = arith.constant 0 : index
    %0 = vector.load %arg1[%c0, %c0_0] : memref<128x128xbf16, #tpu.memory_space<vmem>>, vector<128x128xbf16>
    %c0_1 = arith.constant 0 : index
    %c0_2 = arith.constant 0 : index
    %1 = vector.load %arg0[%c0_1, %c0_2] : memref<4x128xf32, #tpu.memory_space<vmem>>, vector<4x128xf32>
    %c0_3 = arith.constant 0 : index
    %c0_4 = arith.constant 0 : index
    %2 = vector.load %arg3[%c0_3, %c0_4] : memref<32x12xbf16, #tpu.memory_space<vmem>>, vector<32x12xbf16>
    %c0_5 = arith.constant 0 : index
    %c0_6 = arith.constant 0 : index
    %3 = vector.load %arg4[%c0_5, %c0_6] : memref<32x1xf32, #tpu.memory_space<vmem>>, vector<32x1xf32>
    %4 = arith.truncf %1 : vector<4x128xf32> to vector<4x128xbf16>
    %cst = arith.constant dense<0.000000e+00> : vector<4x128xf32>
    %5 = tpu.matmul %4, %0, %cst {dimension_numbers = #tpu.dot_dimension_numbers<[1], [0], [0], [1], [0, 0, 1, 1], [], []>} : vector<4x128xbf16>, vector<128x128xbf16>, vector<4x128xf32> -> vector<4x128xf32>
    %6 = arith.truncf %5 : vector<4x128xf32> to vector<4x128xbf16>
    %cst_7 = arith.constant dense<0.000000e+00> : vector<4x128xf32>
    %7 = tpu.matmul %6, %0, %cst_7 {dimension_numbers = #tpu.dot_dimension_numbers<[1], [0], [0], [1], [0, 0, 1, 1], [], []>} : vector<4x128xbf16>, vector<128x128xbf16>, vector<4x128xf32> -> vector<4x128xf32>
    %cst_8 = arith.constant 2.000000e+00 : f32
    %8 = vector.broadcast %cst_8 : f32 to vector<4x128xf32>
    %9 = arith.mulf %8, %7 : vector<4x128xf32>
    %10 = arith.subf %9, %1 : vector<4x128xf32>
    %11 = tpu.concatenate %1, %5, %10 in 0 : vector<4x128xf32>, vector<4x128xf32>, vector<4x128xf32> -> vector<12x128xf32>
    %12 = arith.truncf %11 : vector<12x128xf32> to vector<12x128xbf16>
    %cst_9 = arith.constant dense<0.000000e+00> : vector<32x128xf32>
    %13 = tpu.matmul %2, %12, %cst_9 {dimension_numbers = #tpu.dot_dimension_numbers<[1], [0], [0], [1], [0, 0, 1, 1], [], []>} : vector<32x12xbf16>, vector<12x128xbf16>, vector<32x128xf32> -> vector<32x128xf32>
    %14 = vector.broadcast %3 : vector<32x1xf32> to vector<32x128xf32>
    %15 = arith.addf %13, %14 : vector<32x128xf32>
    %cst_10 = arith.constant 0.000000e+00 : f32
    %16 = vector.broadcast %cst_10 : f32 to vector<32x128xf32>
    %17 = arith.maximumf %15, %16 : vector<32x128xf32>
    %c0_11 = arith.constant 0 : index
    %c0_12 = arith.constant 0 : index
    %18 = vector.load %arg5[%c0_11, %c0_12] : memref<32x96xbf16, #tpu.memory_space<vmem>>, vector<32x96xbf16>
    %c0_13 = arith.constant 0 : index
    %c0_14 = arith.constant 0 : index
    %19 = vector.load %arg6[%c0_13, %c0_14] : memref<32x1xf32, #tpu.memory_space<vmem>>, vector<32x1xf32>
    %20 = arith.truncf %17 : vector<32x128xf32> to vector<32x128xbf16>
    %cst_15 = arith.constant dense<0.000000e+00> : vector<32x128xf32>
    %21 = tpu.matmul %20, %0, %cst_15 {dimension_numbers = #tpu.dot_dimension_numbers<[1], [0], [0], [1], [0, 0, 1, 1], [], []>} : vector<32x128xbf16>, vector<128x128xbf16>, vector<32x128xf32> -> vector<32x128xf32>
    %22 = arith.truncf %21 : vector<32x128xf32> to vector<32x128xbf16>
    %cst_16 = arith.constant dense<0.000000e+00> : vector<32x128xf32>
    %23 = tpu.matmul %22, %0, %cst_16 {dimension_numbers = #tpu.dot_dimension_numbers<[1], [0], [0], [1], [0, 0, 1, 1], [], []>} : vector<32x128xbf16>, vector<128x128xbf16>, vector<32x128xf32> -> vector<32x128xf32>
    %cst_17 = arith.constant 2.000000e+00 : f32
    %24 = vector.broadcast %cst_17 : f32 to vector<32x128xf32>
    %25 = arith.mulf %24, %23 : vector<32x128xf32>
    %26 = arith.subf %25, %17 : vector<32x128xf32>
    %27 = tpu.concatenate %17, %21, %26 in 0 : vector<32x128xf32>, vector<32x128xf32>, vector<32x128xf32> -> vector<96x128xf32>
    %28 = arith.truncf %27 : vector<96x128xf32> to vector<96x128xbf16>
    %cst_18 = arith.constant dense<0.000000e+00> : vector<32x128xf32>
    %29 = tpu.matmul %18, %28, %cst_18 {dimension_numbers = #tpu.dot_dimension_numbers<[1], [0], [0], [1], [0, 0, 1, 1], [], []>} : vector<32x96xbf16>, vector<96x128xbf16>, vector<32x128xf32> -> vector<32x128xf32>
    %30 = vector.broadcast %19 : vector<32x1xf32> to vector<32x128xf32>
    %31 = arith.addf %29, %30 : vector<32x128xf32>
    %cst_19 = arith.constant 0.000000e+00 : f32
    %32 = vector.broadcast %cst_19 : f32 to vector<32x128xf32>
    %33 = arith.maximumf %31, %32 : vector<32x128xf32>
    %34 = arith.truncf %33 : vector<32x128xf32> to vector<32x128xbf16>
    %c0_20 = arith.constant 0 : index
    %c0_21 = arith.constant 0 : index
    %35 = vector.load %arg2[%c0_20, %c0_21] : memref<128x2xbf16, #tpu.memory_space<vmem>>, vector<128x2xbf16>
    %cst_22 = arith.constant dense<0.000000e+00> : vector<32x2xf32>
    %36 = tpu.matmul %34, %35, %cst_22 {dimension_numbers = #tpu.dot_dimension_numbers<[1], [0], [0], [1], [0, 0, 1, 1], [], []>} : vector<32x128xbf16>, vector<128x2xbf16>, vector<32x2xf32> -> vector<32x2xf32>
    %c0_23 = arith.constant 0 : index
    %c0_24 = arith.constant 0 : index
    %37 = vector.load %arg7[%c0_23, %c0_24] : memref<8x32xf32, #tpu.memory_space<vmem>>, vector<8x32xf32>
    %cst_25 = arith.constant dense<0.000000e+00> : vector<8x2xf32>
    %38 = tpu.matmul %37, %36, %cst_25 {dimension_numbers = #tpu.dot_dimension_numbers<[1], [0], [0], [1], [0, 0, 1, 1], [], []>} : vector<8x32xf32>, vector<32x2xf32>, vector<8x2xf32> -> vector<8x2xf32>
    %c0_26 = arith.constant 0 : index
    %c0_27 = arith.constant 0 : index
    %39 = vector.load %arg8[%c0_26, %c0_27] : memref<8x1xf32, #tpu.memory_space<vmem>>, vector<8x1xf32>
    %40 = vector.broadcast %39 : vector<8x1xf32> to vector<8x2xf32>
    %41 = arith.addf %38, %40 : vector<8x2xf32>
    %c0_28 = arith.constant 0 : index
    %c0_29 = arith.constant 0 : index
    %42 = vector.load %arg9[%c0_28, %c0_29] : memref<8x2xf32, #tpu.memory_space<vmem>>, vector<8x2xf32>
    tpu.vector_store %arg9[%c0_28, %c0_29], %41 {strides = array<i32>} : memref<8x2xf32, #tpu.memory_space<vmem>>, vector<8x2xf32>,
    return
  }
}

</mosaic_0001>

<llo_original>
// kernel: tpu_custom_call.1
$region0: #{tpu_custom_call.1}
  #allocation0 [shape = 'u32[]', space=smem, size = 0x4, offset = 0x4, fixed_abs, tag = 'smem constant byte address 0x4 - core index']
  #allocation1 [shape = 'u32[72,128]{1,0:T(1,128)}', space=vmem, size = 0x9000, scoped, tag = 'internal scratch']
  %s0 = inlined_call_operand.vmem [shape: f32[4,128], index: 0, kind: input, shape index: {}]
  %s1 = inlined_call_operand.vmem [shape: bf16[128,128], index: 1, kind: input, shape index: {}]
  %s2 = inlined_call_operand.vmem [shape: bf16[128,2], index: 2, kind: input, shape index: {}]
  %s3 = inlined_call_operand.vmem [shape: bf16[32,12], index: 3, kind: input, shape index: {}]
  %s4 = inlined_call_operand.vmem [shape: f32[32,1], index: 4, kind: input, shape index: {}]
  %s5 = inlined_call_operand.vmem [shape: bf16[32,96], index: 5, kind: input, shape index: {}]
  %s6 = inlined_call_operand.vmem [shape: f32[32,1], index: 6, kind: input, shape index: {}]
  %s7 = inlined_call_operand.vmem [shape: f32[8,32], index: 7, kind: input, shape index: {}]
  %s8 = inlined_call_operand.vmem [shape: f32[8,1], index: 8, kind: input, shape index: {}]
  %s9 = inlined_call_operand.vmem [shape: f32[8,2], index: 9, kind: output, shape index: {}]
  %s10 = sld [smem:[#allocation0]]
  $region46: #{tpu_custom_call.1} parent=0
    _
  %s12 = ssub.s32 1, %s10
  %s13 = scalar_select 0, %s12, %s10
  // Predicated region
  $region2: #{tpu_custom_call.1} parent=0 // pred_check
    _
  $region3: #{tpu_custom_call.1} parent=0 // pred_check_branch
    %15 = sbr.rel (0) target = $region5
  $region4: #{tpu_custom_call.1} parent=0 // pred_region
    _
  $region5: #{tpu_custom_call.1} parent=0 // pred_fallthru
    _
  // Predicated region
  $region6: #{tpu_custom_call.1} parent=0 // pred_check
    _
  $region7: #{tpu_custom_call.1} parent=0 // pred_check_branch
    %17 = sbr.rel (0) target = $region9
  $region8: #{tpu_custom_call.1} parent=0 // pred_region
    _
  $region9: #{tpu_custom_call.1} parent=0 // pred_fallthru
    _
  // Predicated region
  $region10: #{tpu_custom_call.1} parent=0 // pred_check
    _
  $region11: #{tpu_custom_call.1} parent=0 // pred_check_branch
    %19 = sbr.rel (0) target = $region13
  $region12: #{tpu_custom_call.1} parent=0 // pred_region
    _
  $region13: #{tpu_custom_call.1} parent=0 // pred_fallthru
    _
  // Predicated region
  $region14: #{tpu_custom_call.1} parent=0 // pred_check
    _
  $region15: #{tpu_custom_call.1} parent=0 // pred_check_branch
    %21 = sbr.rel (0) target = $region17
  $region16: #{tpu_custom_call.1} parent=0 // pred_region
    _
  $region17: #{tpu_custom_call.1} parent=0 // pred_fallthru
    _
  // Predicated region
  $region18: #{tpu_custom_call.1} parent=0 // pred_check
    _
  $region19: #{tpu_custom_call.1} parent=0 // pred_check_branch
    %23 = sbr.rel (0) target = $region21
  $region20: #{tpu_custom_call.1} parent=0 // pred_region
    _
  $region21: #{tpu_custom_call.1} parent=0 // pred_fallthru
    _
  // Predicated region
  $region22: #{tpu_custom_call.1} parent=0 // pred_check
    _
  $region23: #{tpu_custom_call.1} parent=0 // pred_check_branch
    %25 = sbr.rel (0) target = $region25
  $region24: #{tpu_custom_call.1} parent=0 // pred_region
    _
  $region25: #{tpu_custom_call.1} parent=0 // pred_fallthru
    _
  // Predicated region
  $region26: #{tpu_custom_call.1} parent=0 // pred_check
    _
  $region27: #{tpu_custom_call.1} parent=0 // pred_check_branch
    %27 = sbr.rel (0) target = $region29
  $region28: #{tpu_custom_call.1} parent=0 // pred_region
    _
  $region29: #{tpu_custom_call.1} parent=0 // pred_fallthru
    _
  // Predicated region
  $region30: #{tpu_custom_call.1} parent=0 // pred_check
    _
  $region31: #{tpu_custom_call.1} parent=0 // pred_check_branch
    %29 = sbr.rel (0) target = $region33
  $region32: #{tpu_custom_call.1} parent=0 // pred_region
    _
  $region33: #{tpu_custom_call.1} parent=0 // pred_fallthru
    _
  // Predicated region
  $region34: #{tpu_custom_call.1} parent=0 // pred_check
    _
  $region35: #{tpu_custom_call.1} parent=0 // pred_check_branch
    %31 = sbr.rel (0) target = $region37
  $region36: #{tpu_custom_call.1} parent=0 // pred_region
    _
  $region37: #{tpu_custom_call.1} parent=0 // pred_fallthru
    _
  %v33 = vld [vmem:[%s1] sm:$0xf]
  %v34 = vld [vmem:[%s1 + $0x4] sm:$0xf]
  %v35 = vld [vmem:[%s1 + $0x8] sm:$0xf]
  %v36 = vld [vmem:[%s1 + $0xc] sm:$0xf]
  %v37 = vld [vmem:[%s1 + $0x10] sm:$0xf]
  %v38 = vld [vmem:[%s1 + $0x14] sm:$0xf]
  %v39 = vld [vmem:[%s1 + $0x18] sm:$0xf]
  %v40 = vld [vmem:[%s1 + $0x1c] sm:$0xf]
  %v41 = vld [vmem:[%s1 + $0x20] sm:$0xf]
  %v42 = vld [vmem:[%s1 + $0x24] sm:$0xf]
  %v43 = vld [vmem:[%s1 + $0x28] sm:$0xf]
  %v44 = vld [vmem:[%s1 + $0x2c] sm:$0xf]
  %v45 = vld [vmem:[%s1 + $0x30] sm:$0xf]
  %v46 = vld [vmem:[%s1 + $0x34] sm:$0xf]
  %v47 = vld [vmem:[%s1 + $0x38] sm:$0xf]
  %v48 = vld [vmem:[%s1 + $0x3c] sm:$0xf]
  %v49 = vld [vmem:[%s0] sm:$0xf]
  %v50 = vld [vmem:[%s3] sm:$0xf]
  %v51 = vld [vmem:[%s3 + $0x4] sm:$0xf]
  %v52 = vld [vmem:[%s3 + $0x8] sm:$0xf]
  %v53 = vld [vmem:[%s3 + $0xc] sm:$0xf]
  %v54 = vld [vmem:[%s4] sm:$0xff]
  %v55 = vld [vmem:[%s4 + $0x8] sm:$0xff]
  %v56 = vld [vmem:[%s4 + $0x10] sm:$0xff]
  %v57 = vld [vmem:[%s4 + $0x18] sm:$0xff]
  %v58 = vpack.c.bf16 %v49, %v49
  %v75 = vunpack.c.l.b16 %v33
  %v76 = vunpack.c.l.b16 %v34
  %v77 = vunpack.c.l.b16 %v35
  %v78 = vunpack.c.l.b16 %v36
  %v79 = vunpack.c.l.b16 %v37
  %v80 = vunpack.c.l.b16 %v38
  %v81 = vunpack.c.l.b16 %v39
  %v82 = vunpack.c.l.b16 %v40
  %v83 = vunpack.c.l.b16 %v41
  %v84 = vunpack.c.l.b16 %v42
  %v85 = vunpack.c.l.b16 %v43
  %v86 = vunpack.c.l.b16 %v44
  %v87 = vunpack.c.l.b16 %v45
  %v88 = vunpack.c.l.b16 %v46
  %v89 = vunpack.c.l.b16 %v47
  %v90 = vunpack.c.l.b16 %v48
  %v91 = vpack.c.b16 %v76, %v75
  %v92 = vpack.c.b16 %v78, %v77
  %v93 = vpack.c.b16 %v80, %v79
  %v94 = vpack.c.b16 %v82, %v81
  %v95 = vpack.c.b16 %v84, %v83
  %v96 = vpack.c.b16 %v86, %v85
  %v97 = vpack.c.b16 %v88, %v87
  %v98 = vpack.c.b16 %v90, %v89
  %107 = vmatpush.bf16.msra.mxu0 %v98
  %108 = vmatpush.bf16.msra.mxu0 %v97
  %109 = vmatpush.bf16.msra.mxu0 %v96
  %110 = vmatpush.bf16.msra.mxu0 %v95
  %111 = vmatpush.bf16.msra.mxu0 %v94
  %112 = vmatpush.bf16.msra.mxu0 %v93
  %113 = vmatpush.bf16.msra.mxu0 %v92
  %114 = vmatpush.bf16.msra.mxu0 %v91
  %115 = vmatmul.bf16.gmra.mxu0 %v58
  %v116 = vpop.f32.mrf.mxu0
  %v117 = vadd.f32 0.0, %v116
  %v118 = vpop.f32.mrf.mxu0
  %119 = vdwg.mxu0
  %v120 = vpack.c.bf16 %v117, %v117
  %121 = vmatpush.bf16.msra.mxu0 %v98
  %122 = vmatpush.bf16.msra.mxu0 %v97
  %123 = vmatpush.bf16.msra.mxu0 %v96
  %124 = vmatpush.bf16.msra.mxu0 %v95
  %125 = vmatpush.bf16.msra.mxu0 %v94
  %126 = vmatpush.bf16.msra.mxu0 %v93
  %127 = vmatpush.bf16.msra.mxu0 %v92
  %128 = vmatpush.bf16.msra.mxu0 %v91
  %129 = vmatmul.bf16.gmra.mxu0 %v120
  %v130 = vpop.f32.mrf.mxu0
  %v131 = vadd.f32 0.0, %v130
  %v132 = vpop.f32.mrf.mxu0
  %133 = vdwg.mxu0
  %v134 = vmul.f32 %v131, 2.0
  %v135 = vsub.f32 %v134, %v49
  %v137 = vrot.slane %v117, 4
  %vm139 = vcmask 1043456
  %v140 = vsel %vm139, %v49, %v137
  %v141 = vpack.c.bf16 %v135, %v140
  %143 = vset.pattern.permute.xlu0 0
  %144 = vperm.xlu0 %143, %v54
  %v145 = vpop.permute.xlu0 %144
  %148 = vset.pattern.permute.xlu0 0
  %149 = vperm.xlu0 %148, %v55
  %v150 = vpop.permute.xlu0 %149
  %153 = vset.pattern.permute.xlu0 0
  %154 = vperm.xlu0 %153, %v56
  %v155 = vpop.permute.xlu0 %154
  %158 = vset.pattern.permute.xlu0 0
  %159 = vperm.xlu0 %158, %v57
  %v160 = vpop.permute.xlu0 %159
  %v166 = vunpack.c.l.b16 %v50
  %v167 = vunpack.c.l.b16 %v51
  %v168 = vunpack.c.l.b16 %v52
  %v169 = vunpack.c.l.b16 %v53
  %v170 = vpack.c.b16 %v167, %v166
  %v171 = vpack.c.b16 %v169, %v168
  %vm172 = vcmask 97280
  %v174 = vsel %vm172, %v170, 0
  %v177 = vsel %vm172, %v171, 0
  %vm179 = vcmask 1045504
  %v181 = vsel %vm179, %v141, 0
  %183 = vmatpush.bf16.msra.mxu0 0
  %184 = vmatpush.bf16.msra.mxu0 0
  %185 = vmatpush.bf16.msra.mxu0 0
  %186 = vmatpush.bf16.msra.mxu0 0
  %187 = vmatpush.bf16.msra.mxu0 0
  %188 = vmatpush.bf16.msra.mxu0 0
  %189 = vmatpush.bf16.msra.mxu0 0
  %190 = vmatpush.bf16.msra.mxu0 %v181
  %191 = vmatmul.bf16.gmra.mxu0 %v174
  %v192 = vpop.f32.mrf.mxu0
  %v193 = vadd.f32 %v145, %v192
  %v194 = vpop.f32.mrf.mxu0
  %v195 = vadd.f32 %v150, %v194
  %196 = vmatmul.bf16.gmra.mxu0 %v177
  %v197 = vpop.f32.mrf.mxu0
  %v198 = vadd.f32 %v155, %v197
  %v199 = vpop.f32.mrf.mxu0
  %v200 = vadd.f32 %v160, %v199
  %201 = vdwg.mxu0
  %v202 = vmax.f32 %v193, 0.0
  %v203 = vmax.f32 %v195, 0.0
  %v204 = vmax.f32 %v198, 0.0
  %v205 = vmax.f32 %v200, 0.0
  %v206 = vld [vmem:[%s5] sm:$0xf]
  %v207 = vld [vmem:[%s5 + $0x4] sm:$0xf]
  %v208 = vld [vmem:[%s5 + $0x8] sm:$0xf]
  %v209 = vld [vmem:[%s5 + $0xc] sm:$0xf]
  %v210 = vld [vmem:[%s6] sm:$0xff]
  %v211 = vld [vmem:[%s6 + $0x8] sm:$0xff]
  %v212 = vld [vmem:[%s6 + $0x10] sm:$0xff]
  %v213 = vld [vmem:[%s6 + $0x18] sm:$0xff]
  %v214 = vpack.c.bf16 %v203, %v202
  %v215 = vpack.c.bf16 %v205, %v204
  %216 = vmatpush.bf16.msra.mxu0 %v98
  %217 = vmatpush.bf16.msra.mxu0 %v97
  %218 = vmatpush.bf16.msra.mxu0 %v96
  %219 = vmatpush.bf16.msra.mxu0 %v95
  %220 = vmatpush.bf16.msra.mxu0 %v94
  %221 = vmatpush.bf16.msra.mxu0 %v93
  %222 = vmatpush.bf16.msra.mxu0 %v92
  %223 = vmatpush.bf16.msra.mxu0 %v91
  %224 = vmatmul.bf16.gmra.mxu0 %v214
  %v225 = vpop.f32.mrf.mxu0
  %v226 = vadd.f32 0.0, %v225
  %v227 = vpop.f32.mrf.mxu0
  %v228 = vadd.f32 0.0, %v227
  %229 = vmatmul.bf16.gmra.mxu0 %v215
  %v230 = vpop.f32.mrf.mxu0
  %v231 = vadd.f32 0.0, %v230
  %v232 = vpop.f32.mrf.mxu0
  %v233 = vadd.f32 0.0, %v232
  %234 = vdwg.mxu0
  %v235 = vpack.c.bf16 %v228, %v226
  %v236 = vpack.c.bf16 %v233, %v231
  %237 = vmatpush.bf16.msra.mxu0 %v98
  %238 = vmatpush.bf16.msra.mxu0 %v97
  %239 = vmatpush.bf16.msra.mxu0 %v96
  %240 = vmatpush.bf16.msra.mxu0 %v95
  %241 = vmatpush.bf16.msra.mxu0 %v94
  %242 = vmatpush.bf16.msra.mxu0 %v93
  %243 = vmatpush.bf16.msra.mxu0 %v92
  %244 = vmatpush.bf16.msra.mxu0 %v91
  %245 = vmatmul.bf16.gmra.mxu0 %v235
  %v246 = vpop.f32.mrf.mxu0
  %v247 = vadd.f32 0.0, %v246
  %v248 = vpop.f32.mrf.mxu0
  %v249 = vadd.f32 0.0, %v248
  %250 = vmatmul.bf16.gmra.mxu0 %v236
  %v251 = vpop.f32.mrf.mxu0
  %v252 = vadd.f32 0.0, %v251
  %v253 = vpop.f32.mrf.mxu0
  %v254 = vadd.f32 0.0, %v253
  %255 = vdwg.mxu0
  %v256 = vmul.f32 %v247, 2.0
  %v257 = vmul.f32 %v249, 2.0
  %v258 = vmul.f32 %v252, 2.0
  %v259 = vmul.f32 %v254, 2.0
  %v260 = vsub.f32 %v256, %v202
  %v261 = vsub.f32 %v257, %v203
  %v262 = vsub.f32 %v258, %v204
  %v263 = vsub.f32 %v259, %v205
  %v264 = vpack.c.bf16 %v261, %v260
  %v265 = vpack.c.bf16 %v263, %v262
  %267 = vset.pattern.permute.xlu0 0
  %268 = vperm.xlu0 %267, %v210
  %v269 = vpop.permute.xlu0 %268
  %272 = vset.pattern.permute.xlu0 0
  %273 = vperm.xlu0 %272, %v211
  %v274 = vpop.permute.xlu0 %273
  %277 = vset.pattern.permute.xlu0 0
  %278 = vperm.xlu0 %277, %v212
  %v279 = vpop.permute.xlu0 %278
  %282 = vset.pattern.permute.xlu0 0
  %283 = vperm.xlu0 %282, %v213
  %v284 = vpop.permute.xlu0 %283
  %v290 = vunpack.c.l.b16 %v206
  %v291 = vunpack.c.l.b16 %v207
  %v292 = vunpack.c.l.b16 %v208
  %v293 = vunpack.c.l.b16 %v209
  %v294 = vpack.c.b16 %v291, %v290
  %v295 = vpack.c.b16 %v293, %v292
  %vm296 = vcmask 785408
  %v298 = vsel %vm296, %v294, 0
  %v301 = vsel %vm296, %v295, 0
  %303 = vmatpush.bf16.msra.mxu0 0
  %304 = vmatpush.bf16.msra.mxu0 0
  %305 = vmatpush.bf16.msra.mxu0 %v265
  %306 = vmatpush.bf16.msra.mxu0 %v264
  %307 = vmatpush.bf16.msra.mxu0 %v236
  %308 = vmatpush.bf16.msra.mxu0 %v235
  %309 = vmatpush.bf16.msra.mxu0 %v215
  %310 = vmatpush.bf16.msra.mxu0 %v214
  %311 = vmatmul.bf16.gmra.mxu0 %v298
  %v312 = vpop.f32.mrf.mxu0
  %v313 = vadd.f32 %v269, %v312
  %v314 = vpop.f32.mrf.mxu0
  %v315 = vadd.f32 %v274, %v314
  %316 = vmatmul.bf16.gmra.mxu0 %v301
  %v317 = vpop.f32.mrf.mxu0
  %v318 = vadd.f32 %v279, %v317
  %v319 = vpop.f32.mrf.mxu0
  %v320 = vadd.f32 %v284, %v319
  %321 = vdwg.mxu0
  %v322 = vmax.f32 %v313, 0.0
  %v323 = vmax.f32 %v315, 0.0
  %v324 = vmax.f32 %v318, 0.0
  %v325 = vmax.f32 %v320, 0.0
  %v326 = vpack.c.bf16 %v323, %v322
  %v327 = vpack.c.bf16 %v325, %v324
  %v328 = vld [vmem:[%s2] sm:$0xf]
  %v329 = vld [vmem:[%s2 + $0x4] sm:$0xf]
  %v330 = vld [vmem:[%s2 + $0x8] sm:$0xf]
  %v331 = vld [vmem:[%s2 + $0xc] sm:$0xf]
  %v332 = vld [vmem:[%s2 + $0x10] sm:$0xf]
  %v333 = vld [vmem:[%s2 + $0x14] sm:$0xf]
  %v334 = vld [vmem:[%s2 + $0x18] sm:$0xf]
  %v335 = vld [vmem:[%s2 + $0x1c] sm:$0xf]
  %v336 = vld [vmem:[%s2 + $0x20] sm:$0xf]
  %v337 = vld [vmem:[%s2 + $0x24] sm:$0xf]
  %v338 = vld [vmem:[%s2 + $0x28] sm:$0xf]
  %v339 = vld [vmem:[%s2 + $0x2c] sm:$0xf]
  %v340 = vld [vmem:[%s2 + $0x30] sm:$0xf]
  %v341 = vld [vmem:[%s2 + $0x34] sm:$0xf]
  %v342 = vld [vmem:[%s2 + $0x38] sm:$0xf]
  %v343 = vld [vmem:[%s2 + $0x3c] sm:$0xf]
  %v360 = vunpack.c.l.b16 %v328
  %v361 = vunpack.c.l.b16 %v329
  %v362 = vunpack.c.l.b16 %v330
  %v363 = vunpack.c.l.b16 %v331
  %v364 = vunpack.c.l.b16 %v332
  %v365 = vunpack.c.l.b16 %v333
  %v366 = vunpack.c.l.b16 %v334
  %v367 = vunpack.c.l.b16 %v335
  %v368 = vunpack.c.l.b16 %v336
  %v369 = vunpack.c.l.b16 %v337
  %v370 = vunpack.c.l.b16 %v338
  %v371 = vunpack.c.l.b16 %v339
  %v372 = vunpack.c.l.b16 %v340
  %v373 = vunpack.c.l.b16 %v341
  %v374 = vunpack.c.l.b16 %v342
  %v375 = vunpack.c.l.b16 %v343
  %v376 = vpack.c.b16 %v361, %v360
  %v377 = vpack.c.b16 %v363, %v362
  %v378 = vpack.c.b16 %v365, %v364
  %v379 = vpack.c.b16 %v367, %v366
  %v380 = vpack.c.b16 %v369, %v368
  %v381 = vpack.c.b16 %v371, %v370
  %v382 = vpack.c.b16 %v373, %v372
  %v383 = vpack.c.b16 %v375, %v374
  %392 = vmatpush.bf16.msra.mxu0 %v383
  %393 = vmatpush.bf16.msra.mxu0 %v382
  %394 = vmatpush.bf16.msra.mxu0 %v381
  %395 = vmatpush.bf16.msra.mxu0 %v380
  %396 = vmatpush.bf16.msra.mxu0 %v379
  %397 = vmatpush.bf16.msra.mxu0 %v378
  %398 = vmatpush.bf16.msra.mxu0 %v377
  %399 = vmatpush.bf16.msra.mxu0 %v376
  %400 = vmatmul.bf16.gmra.mxu0 %v326
  %v401 = vpop.f32.mrf.mxu0
  %v402 = vadd.f32 0.0, %v401
  %v403 = vpop.f32.mrf.mxu0
  %v404 = vadd.f32 0.0, %v403
  %405 = vmatmul.bf16.gmra.mxu0 %v327
  %v406 = vpop.f32.mrf.mxu0
  %v407 = vadd.f32 0.0, %v406
  %v408 = vpop.f32.mrf.mxu0
  %v409 = vadd.f32 0.0, %v408
  %410 = vdwg.mxu0
  %v411 = vld [vmem:[%s7] sm:$0xff]
  %v412 = vld [vmem:[%s8] sm:$0xff]
  %414 = vset.pattern.permute.xlu0 0
  %415 = vperm.xlu0 %414, %v412
  %v416 = vpop.permute.xlu0 %415
  %vm418 = vcmask 261120
  %v420 = vsel %vm418, %v411, 0
  %422 = vmatpush.msra.mxu0 0.0
  %423 = vmatpush.msra.mxu0 0.0
  %424 = vmatpush.msra.mxu0 0.0
  %425 = vmatpush.msra.mxu0 0.0
  %426 = vmatpush.msra.mxu0 0.0
  %427 = vmatpush.msra.mxu0 0.0
  %428 = vmatpush.msra.mxu0 0.0
  %429 = vmatpush.msra.mxu0 0.0
  %430 = vmatpush.msra.mxu0 0.0
  %431 = vmatpush.msra.mxu0 0.0
  %432 = vmatpush.msra.mxu0 0.0
  %433 = vmatpush.msra.mxu0 0.0
  %434 = vmatpush.msra.mxu0 %v409
  %435 = vmatpush.msra.mxu0 %v407
  %436 = vmatpush.msra.mxu0 %v404
  %437 = vmatpush.msra.mxu0 %v402
  %438 = vmatmul.f32.gmra.mxu0 %v420
  %v439 = vpop.f32.mrf.mxu0
  %v440 = vadd.f32 %v416, %v439
  %441 = vdwg.mxu0
  %vm442 = vcmask 15360
  %443 = vst.msk [vmem:[%s9] sm:$0xff] %vm442, %v440
  // Predicated region
  $region38: #{tpu_custom_call.1} parent=0 // pred_check
    _
  $region39: #{tpu_custom_call.1} parent=0 // pred_check_branch
    %445 = sbr.rel (0) target = $region41
  $region40: #{tpu_custom_call.1} parent=0 // pred_region
    _
  $region41: #{tpu_custom_call.1} parent=0 // pred_fallthru
    _
  // Predicated region
  $region42: #{tpu_custom_call.1} parent=0 // pred_check
    _
  $region43: #{tpu_custom_call.1} parent=0 // pred_check_branch
    %447 = sbr.rel (0) target = $region45
  $region44: #{tpu_custom_call.1} parent=0 // pred_region
    _
  $region45: #{tpu_custom_call.1} parent=0 // pred_fallthru
    _

</llo_original>
